<compile_context>
chip_gen: v5e
topology: v5e:2x2
jax: 0.10.0
libtpu: 0.0.40
codegen_flags: <defaults>
</compile_context>

<pallas_src>
import functools

import jax
import jax.numpy as jnp
from jax import lax
from jax.experimental import pallas as pl
from jax.experimental.pallas import tpu as pltpu

_SUBLANE = 8
_RESIDENT_TABLE_BUDGET = 8 * 1024 * 1024   # keep table VMEM-resident below this (safe v5e/v6e/v7x)
_VMEM_LIMIT_BYTES = 32 * 1024 * 1024       # <= physical VMEM on every TPU generation


def _pick_block_tokens(n_tokens, desired):
    """Sublane-aligned token block; aim for >= 2 grid blocks (v7x has 2 TCs)."""
    desired = max(_SUBLANE, (desired // _SUBLANE) * _SUBLANE)
    half = -(-n_tokens // 2)
    tn = max(_SUBLANE, min(desired, half))
    return -(-tn // _SUBLANE) * _SUBLANE


def _row_gather_kernel(idx_ref, ntok_ref, emb_ref, o_ref, sem, *, tokens_per_block):
    """Gather one block of embedding rows directly into the output block.

    idx_ref  : SMEM int32 [n_pad]         scalar-prefetched (clamped) token ids
    ntok_ref : SMEM int32 [1]             real (un-padded) token count
    emb_ref  : [V, D] table, VMEM-resident or HBM (memory_space=pl.ANY)
    o_ref    : VMEM [tokens_per_block, D] current output block (DMA destination)
    sem      : ()-shaped DMA semaphore shared by every row copy of this block
    """
    base = pl.program_id(0) * tokens_per_block
    n_valid = jnp.minimum(ntok_ref[0] - base, tokens_per_block)  # skip pad slots

    def _issue(r, carry):
        row = idx_ref[base + r]                      # scalar read from SMEM
        pltpu.make_async_copy(
            emb_ref.at[pl.ds(row, 1), :],            # one table row
            o_ref.at[pl.ds(r, 1), :],                # straight into the output block
            sem,
        ).start()
        return carry

    def _drain(r, carry):
        # Same-sized descriptor: only the semaphore / byte count matter for wait().
        pltpu.make_async_copy(
            emb_ref.at[pl.ds(0, 1), :], o_ref.at[pl.ds(0, 1), :], sem,
        ).wait()
        return carry

    lax.fori_loop(0, n_valid, _issue, 0)   # all row copies in flight concurrently
    lax.fori_loop(0, n_valid, _drain, 0)   # body ends only after every row landed


def _onehot_gather_kernel(idx_ref, emb_ref, o_ref):
    """Tiny-vocabulary variant: gather = one_hot(idx) @ table on the MXU."""
    idx = idx_ref[...]                                           # (tn, 1) int32
    v_pad = emb_ref.shape[0]
    cols = lax.broadcasted_iota(jnp.int32, (idx.shape[0], v_pad), 1)
    one_hot = (cols == idx).astype(emb_ref.dtype)                # (tn, v_pad)
    o_ref[...] = jnp.dot(
        one_hot, emb_ref[...], preferred_element_type=jnp.float32
    ).astype(o_ref.dtype)


def embedding_forward(idx, embeddings, *, block_tokens=256, gather_mode="rows",
                      keep_table_in_vmem=None):
    """F.embedding(idx, embeddings): returns embeddings[idx], shape idx.shape + (D,)."""
    V, D = embeddings.shape
    idx_shape = idx.shape
    flat = jnp.clip(idx.reshape(-1).astype(jnp.int32), 0, V - 1)  # never DMA out of bounds
    n = flat.shape[0]
    tn = _pick_block_tokens(n, block_tokens)
    n_pad = pl.cdiv(n, tn) * tn
    num_blocks = n_pad // tn
    flat = jnp.pad(flat, (0, n_pad - n))

    cparams = pltpu.CompilerParams(
        dimension_semantics=("parallel",),           # independent blocks -> both v7x TCs
        vmem_limit_bytes=_VMEM_LIMIT_BYTES,
    )

    if gather_mode == "onehot":
        # One MXU matmul per block, table resident in VMEM, zero per-row DMAs.
        v_pad = max(128, pl.cdiv(V, 128) * 128)      # MXU-friendly contraction dim
        table = jnp.pad(embeddings, ((0, v_pad - V), (0, 0)))
        idx2d = flat.reshape(n_pad, 1)
        out = pl.pallas_call(
            _onehot_gather_kernel,
            out_shape=jax.ShapeDtypeStruct((n_pad, D), embeddings.dtype),
            grid_spec=pltpu.PrefetchScalarGridSpec(
                num_scalar_prefetch=0,
                grid=(num_blocks,),
                in_specs=[pl.BlockSpec((tn, 1), lambda i: (i, 0)),
                          pl.BlockSpec((v_pad, D), lambda i: (0, 0))],  # resident table
                out_specs=pl.BlockSpec((tn, D), lambda i: (i, 0)),
            ),
            compiler_params=cparams,
        )(idx2d, table)
        return out[:n].reshape(*idx_shape, D)

    # Default: exact row gather via async copies DMA'd directly into o_ref.
    table_bytes = V * D * embeddings.dtype.itemsize
    if keep_table_in_vmem is None:
        keep_table_in_vmem = table_bytes <= _RESIDENT_TABLE_BUDGET
    if keep_table_in_vmem:
        # Constant block index -> table loaded from HBM once, reused every step;
        # the per-row copies become cheap local VMEM->VMEM transfers.
        emb_spec = pl.BlockSpec((V, D), lambda i, idx_r, n_r: (0, 0))
    else:
        # Large vocab: table stays in HBM, rows are gathered with per-row HBM DMAs.
        emb_spec = pl.BlockSpec(memory_space=pl.ANY)

    n_arr = jnp.array([n], dtype=jnp.int32)
    out = pl.pallas_call(
        functools.partial(_row_gather_kernel, tokens_per_block=tn),
        out_shape=jax.ShapeDtypeStruct((n_pad, D), embeddings.dtype),
        grid_spec=pltpu.PrefetchScalarGridSpec(
            num_scalar_prefetch=2,                    # flat indices + token count -> SMEM
            grid=(num_blocks,),
            in_specs=[emb_spec],
            out_specs=pl.BlockSpec((tn, D), lambda i, idx_r, n_r: (i, 0)),
            scratch_shapes=[pltpu.SemaphoreType.DMA(())],   # one shared DMA semaphore
        ),
        compiler_params=cparams,
    )(flat, n_arr, embeddings)
    return out[:n].reshape(*idx_shape, D)


if __name__ == "__main__":
    NUM_EMBEDDINGS, EMBEDDING_DIM = 64, 128           # vocab rows, lane-dense embedding dim
    B, T = 2, 16                                      # 32 tokens -> 2 grid blocks of 16

    key = jax.random.PRNGKey(0)
    k_table, k_idx = jax.random.split(key)
    embeddings = jax.random.normal(
        k_table, (NUM_EMBEDDINGS, EMBEDDING_DIM), dtype=jnp.float32)
    idx = jax.random.randint(k_idx, (B, T), 0, NUM_EMBEDDINGS, dtype=jnp.int32)

    ref = jnp.take(embeddings, idx, axis=0)           # == F.embedding(idx, embeddings)

    # 1) Default path: table resident in VMEM, per-row copies straight into o_ref (exact).
    out = jax.block_until_ready(embedding_forward(idx, embeddings))
    assert out.shape == (B, T, EMBEDDING_DIM), out.shape
    assert bool(jnp.all(out == ref)), float(jnp.max(jnp.abs(out - ref)))

    # 2) Large-vocabulary fallback: table left in HBM (pl.ANY), per-row HBM DMAs (exact).
    out_hbm = jax.block_until_ready(
        embedding_forward(idx, embeddings, keep_table_in_vmem=False))
    assert bool(jnp.all(out_hbm == ref)), float(jnp.max(jnp.abs(out_hbm - ref)))

    # 3) Tiny-vocabulary MXU variant: one-hot x table (accuracy bounded by MXU matmul precision).
    out_oh = jax.block_until_ready(
        embedding_forward(idx, embeddings, gather_mode="onehot"))
    assert bool(jnp.allclose(out_oh, ref, rtol=1e-2, atol=1e-3)), \
        float(jnp.max(jnp.abs(out_oh - ref)))

    print("KERNEL_OK")
</pallas_src>

<mosaic_0001>
module attributes {stable_mosaic.version = 11 : i64} {
  func.func @_row_gather_kernel(%arg0: i32, %arg1: memref<32xi32, #tpu.memory_space<smem>>, %arg2: memref<1xi32, #tpu.memory_space<smem>>, %arg3: memref<64x128xf32, #tpu.memory_space<vmem>>, %arg4: memref<16x128xf32, #tpu.memory_space<vmem>>, %arg5: memref<!tpu.dma_semaphore, #tpu.memory_space<semaphore_mem>>) attributes {dimension_semantics = [#tpu.dimension_semantics<parallel>], iteration_bounds = array<i64: 2>, scalar_prefetch = 2 : i64, scratch_operands = 1 : i64, tpu.core_type = #tpu.core_type<tc>, window_params = [{pipeline_mode = #tpu.pipeline_mode<synchronous>, transform_indices = @transform_0, window_bounds = array<i64: 64, 128>}, {transform_indices = @transform_1, window_bounds = array<i64: 16, 128>}]} {
    %c16_i32 = arith.constant 16 : i32
    %0 = arith.muli %arg0, %c16_i32 : i32
    %c0 = arith.constant 0 : index
    %1 = memref.load %arg2[%c0] : memref<1xi32, #tpu.memory_space<smem>>
    %2 = arith.subi %1, %0 : i32
    %c16_i32_0 = arith.constant 16 : i32
    %3 = arith.minsi %2, %c16_i32_0 : i32
    %c0_i32 = arith.constant 0 : i32
    %c0_i32_1 = arith.constant 0 : i32
    %4 = arith.subi %3, %c0_i32_1 : i32
    %5 = arith.addi %c0_i32_1, %4 : i32
    %c1_i32 = arith.constant 1 : i32
    scf.for %arg6 = %c0_i32_1 to %5 step %c1_i32  : i32 {
      %8 = arith.addi %0, %arg6 : i32
      %9 = arith.index_cast %8 : i32 to index
      %10 = memref.load %arg1[%9] : memref<32xi32, #tpu.memory_space<smem>>
      %c0_i32_5 = arith.constant 0 : i32
      %11 = tpu.memref_slice %arg3[%10, %c0_i32_5] : memref<64x128xf32, #tpu.memory_space<vmem>> -> memref<1x128xf32, #tpu.memory_space<vmem>>
      %c0_i32_6 = arith.constant 0 : i32
      %12 = tpu.memref_slice %arg4[%arg6, %c0_i32_6] : memref<16x128xf32, #tpu.memory_space<vmem>> -> memref<1x128xf32, #tpu.memory_space<vmem>>
      tpu.enqueue_dma source(%11 : memref<1x128xf32, #tpu.memory_space<vmem>>) target(%12 : memref<1x128xf32, #tpu.memory_space<vmem>>) target_semaphore(%arg5 : memref<!tpu.dma_semaphore, #tpu.memory_space<semaphore_mem>>)
    }
    %c0_i32_2 = arith.constant 0 : i32
    %c0_i32_3 = arith.constant 0 : i32
    %6 = arith.subi %3, %c0_i32_3 : i32
    %7 = arith.addi %c0_i32_3, %6 : i32
    %c1_i32_4 = arith.constant 1 : i32
    scf.for %arg6 = %c0_i32_3 to %7 step %c1_i32_4  : i32 {
      %c0_i32_5 = arith.constant 0 : i32
      %c0_i32_6 = arith.constant 0 : i32
      %8 = tpu.memref_slice %arg3[%c0_i32_5, %c0_i32_6] : memref<64x128xf32, #tpu.memory_space<vmem>> -> memref<1x128xf32, #tpu.memory_space<vmem>>
      %c0_i32_7 = arith.constant 0 : i32
      %c0_i32_8 = arith.constant 0 : i32
      %9 = tpu.memref_slice %arg4[%c0_i32_7, %c0_i32_8] : memref<16x128xf32, #tpu.memory_space<vmem>> -> memref<1x128xf32, #tpu.memory_space<vmem>>
      tpu.wait_dma2 semaphore(%arg5 : memref<!tpu.dma_semaphore, #tpu.memory_space<semaphore_mem>>) src(%8 : memref<1x128xf32, #tpu.memory_space<vmem>>) dst(%9 : memref<1x128xf32, #tpu.memory_space<vmem>>)
    }
    return
  }
  func.func @transform_0(%arg0: i32, %arg1: memref<32xi32, #tpu.memory_space<smem>>, %arg2: memref<1xi32, #tpu.memory_space<smem>>) -> (i32, i32) {
    %c0_i32 = arith.constant 0 : i32
    %c0_i32_0 = arith.constant 0 : i32
    %c0_i32_1 = arith.constant 0 : i32
    return %c0_i32, %c0_i32_0 : i32, i32
  }
  func.func @transform_1(%arg0: i32, %arg1: memref<32xi32, #tpu.memory_space<smem>>, %arg2: memref<1xi32, #tpu.memory_space<smem>>) -> (i32, i32) {
    %c0_i32 = arith.constant 0 : i32
    %c0_i32_0 = arith.constant 0 : i32
    return %arg0, %c0_i32 : i32, i32
  }
}

</mosaic_0001>

<llo_original>
// kernel: tpu_custom_call.1
$region0: #{tpu_custom_call.1}
  #allocation0 [shape = 'u32[]', space=smem, size = 0x4, offset = 0x4, fixed_abs, tag = 'smem constant byte address 0x4 - core index']
  #allocation1 [shape = 'u32[72,128]{1,0:T(1,128)}', space=vmem, size = 0x9000, scoped, tag = 'internal scratch']
  #allocation2 [shape = 's32[1]{0}', space=sflag, size = 0x4, scoped, tag = 'scratch operand']
  #allocation3 [shape = 's32[1]{0}', space=sflag, size = 0x4, scoped, tag = 'scoped memory for tpu_custom_call.1']
  #allocation4 [shape = 'u8[512]{0}', space=smem, size = 0x200, scoped, tag = 'prefetched SMEM operand 0']
  #allocation5 [shape = 's32[1]{0:T(128)S(6)}', space=smem, size = 0x200, scoped, tag = 'prefetched SMEM operand 1']
  #allocation10 [shape = 's32[]', space=sflag, size = 0x4, offset = 0, fixed_abs, tag = 'sflag constant byte address 0x0 - dummy sync flag']
  %s0 = inlined_call_operand.vmem [shape: s32[32], index: 0, kind: input, shape index: {}]
  %s1 = inlined_call_operand.<no memory space> [shape: s32[1], index: 1, kind: input, shape index: {}]
  %s2 = inlined_call_operand.hbm [shape: f32[64,128], index: 2, kind: input, shape index: {}]
  %s3 = inlined_call_operand.hbm [shape: f32[32,128], index: 3, kind: output, shape index: {}]
  %s4 = sld [smem:[#allocation0]]
  $region85: #{tpu_custom_call.1} parent=0
    _
  %s6 = ssub.s32 1, %s4
  %s7 = scalar_select 0, %s6, %s4
  %s9 = sshll.u32 %s0, 4
  %s10 = int_to_ptr.vmem [resolvable:$true] %s9
  %12 = dma.vmem_to_smem %s10, 16, [#allocation4], [#allocation3]
  %13 = sst [smem:[#allocation5]] %s1
  %15 = dma.done [#allocation3], 16
  %16 = sfence
  $region1: #{tpu_custom_call.1} parent=0
    #allocation6 [shape = 'u8[32768]{0}', space=vmem, size = 0x8000, scoped, tag = 'input window, operand 2, single buffered']
    #allocation7 [shape = 's32[2]{0}', space=sflag, size = 0x8, scoped, tag = 'scoped memory for tpu_custom_call.1']
    #allocation8 [shape = 's32[2]{0}', space=sflag, size = 0x8, scoped, tag = 'scoped memory for tpu_custom_call.1']
    #allocation9 [shape = 'u8[16384]{0}', space=vmem, size = 0x4000, scoped, tag = 'output window, operand 0']
    %17 = vsyncpa [#allocation7], 0
    %18 = vsyncpa [#allocation8], 0
    %s19 = scalar_lea.sflag [#allocation8], 1
    %20 = vsyncpa %s19, 0
    loop: start=0, step=1, limit=4
    $region2: #{tpu_custom_call.1} parent=1 // loop_pre_header
      _
    $region3: #{tpu_custom_call.1} parent=1 // loop_header
      %s22 = sphi 0, %s26
      %p23 = scmp.ge.s32.totalorder %s22, 4
      %s30 = sphi 0, %s30
      %s32 = sphi 0, %s30
      %s33 = sphi 0, %s32
      %s47 = sphi 0, %s33
      %s53 = sphi 0, %s55
      %s56 = sphi 0, %s53
      %s57 = sphi 0, %s56
      %s73 = sphi 0, %s57
    $region4: #{tpu_custom_call.1} parent=1 // loop_header_branch
      %25 = sbr.rel (%p23) target = $region8
    $region5: #{tpu_custom_call.1} parent=1 // loop_body
      %s27 = ssub.s32 %s22, 1
      %s28 = ssub.s32 %s22, 2
      %s29 = sadd.s32 %s22, 1
      %s31 = sadd.s32 %s30, 1
      %p34 = scmp.eq.s32.totalorder %s22, 1
      %p35 = scmp.ne.s32.totalorder %s30, %s32
      %p36 = scmp.eq.s32.totalorder %s22, 0
      %p37 = por %p35, %p36
      %p38 = scmp.ne.s32.totalorder %s30, %s32
      %p39 = scmp.eq.s32.totalorder %s27, 1
      %p40 = por %p38, %p39
      %p41 = scmp.ne.s32.totalorder %s32, %s33
      %p42 = scmp.eq.s32.totalorder %s27, 0
      %p43 = por %p41, %p42
      %p44 = scmp.ne.s32.totalorder %s32, %s33
      %p45 = scmp.eq.s32.totalorder %s28, 1
      %p46 = por %p44, %p45
      %p48 = scmp.ne.s32.totalorder %s33, %s47
      %p49 = scmp.eq.s32.totalorder %s28, 0
      %p50 = por %p48, %p49
      %s51 = ssub.s32 %s22, %s29
      %p52 = scmp.eq.s32.totalorder %s51, 0
      %s54 = sadd.s32 %s53, 1
      %s55 = scalar_select %p52, %s53, %s54
      %p58 = pneg %p52
      %p59 = scmp.eq.s32.totalorder %s22, 1
      %p60 = por %p58, %p59
      %p61 = scmp.ne.s32.totalorder %s53, %s56
      %p62 = scmp.eq.s32.totalorder %s22, 0
      %p63 = por %p61, %p62
      %p64 = scmp.ne.s32.totalorder %s53, %s56
      %p65 = scmp.eq.s32.totalorder %s27, 1
      %p66 = por %p64, %p65
      %p67 = scmp.ne.s32.totalorder %s56, %s57
      %p68 = scmp.eq.s32.totalorder %s27, 0
      %p69 = por %p67, %p68
      %p70 = scmp.ne.s32.totalorder %s56, %s57
      %p71 = scmp.eq.s32.totalorder %s28, 1
      %p72 = por %p70, %p71
      %p74 = scmp.ne.s32.totalorder %s57, %s73
      %p75 = scmp.eq.s32.totalorder %s28, 0
      %p76 = por %p74, %p75
      %p77 = scmp.le.s32.totalorder 1, %s22
      %p78 = scmp.lt.s32.totalorder %s22, 3
      %p79 = pnand %p77, %p78
      %p80 = pneg %p79
      // Predicated region
      $region9: #{tpu_custom_call.1} parent=5 // pred_check
        _
      $region10: #{tpu_custom_call.1} parent=5 // pred_check_branch
        %82 = sbr.rel (%p79) target = $region12
      $region11: #{tpu_custom_call.1} parent=5 // pred_region
        %s83 = ssub.s32 %s22, 1
        // Predicated region
        $region13: #{tpu_custom_call.1} parent=11 // pred_check
          %p84 = pneg %p43
        $region14: #{tpu_custom_call.1} parent=11 // pred_check_branch
          %86 = sbr.rel (%p84) target = $region16
        $region15: #{tpu_custom_call.1} parent=11 // pred_region
          %88 = vsyncadd [#allocation7], 0
          %s89 = sshll.u32 %s2, 4
          %s90 = int_to_ptr.hbm [resolvable:$true] %s89
          %s91 = sshll.u32 [#allocation6], 4
          %s92 = int_to_ptr.vmem [resolvable:$true] %s91
          %97 = dma.hbm_to_vmem [thread:$0]  %s90, 1024, %s92, [#allocation7], 128, 128, 8
        $region16: #{tpu_custom_call.1} parent=11 // pred_fallthru
          _
      $region12: #{tpu_custom_call.1} parent=5 // pred_fallthru
        _
      %p98 = scmp.lt.s32.totalorder %s22, 2
      // Predicated region
      $region17: #{tpu_custom_call.1} parent=5 // pred_check
        %p99 = pneg %p98
      $region18: #{tpu_custom_call.1} parent=5 // pred_check_branch
        %101 = sbr.rel (%p99) target = $region20
      $region19: #{tpu_custom_call.1} parent=5 // pred_region
        _
      $region20: #{tpu_custom_call.1} parent=5 // pred_fallthru
        _
      %p102 = scmp.le.s32.totalorder 1, %s22
      %p103 = scmp.lt.s32.totalorder %s22, 3
      %p104 = pnand %p102, %p103
      %p105 = pneg %p104
      // Predicated region
      $region21: #{tpu_custom_call.1} parent=5 // pred_check
        _
      $region22: #{tpu_custom_call.1} parent=5 // pred_check_branch
        %107 = sbr.rel (%p104) target = $region24
      $region23: #{tpu_custom_call.1} parent=5 // pred_region
        %s108 = ssub.s32 %s22, 1
        // Predicated region
        $region25: #{tpu_custom_call.1} parent=23 // pred_check
          %p109 = pneg %p43
        $region26: #{tpu_custom_call.1} parent=23 // pred_check_branch
          %111 = sbr.rel (%p109) target = $region28
        $region27: #{tpu_custom_call.1} parent=23 // pred_region
          %113 = dma.done [#allocation7], 1024
        $region28: #{tpu_custom_call.1} parent=23 // pred_fallthru
          _
        %p114 = pneg %p43
        %p115 = pneg %p40
        %p116 = pneg %p69
        %p117 = pneg %p66
        %s118 = sand.u32 %s56, 1
        %s119 = scalar_lea.sflag [#allocation8], %s118
        %s120 = sand.u32 %s56, 1
        %s121 = smul.addr %s120, 16
        %s122 = scalar_lea.vmem [#allocation9], %s121
        %s123 = smul.u32 2, %s27
        %s124 = smul.u32 %s27, 16
        %s125 = sld [smem:[#allocation5]]
        %s126 = ssub.s32 %s125, %s124
        %p127 = scmp.lt.s32.totalorder %s126, 16
        %s128 = scalar_select %p127, %s126, 16
        // While loop
        $region29: #{tpu_custom_call.1} parent=23 // loop_pre_header
          _
        $region30: #{tpu_custom_call.1} parent=23 // loop_header
          %s130 = sphi 0, %s132
          %p131 = scmp.ge.s32.totalorder %s130, %s128
        $region31: #{tpu_custom_call.1} parent=23 // loop_header_branch
          %134 = sbr.rel (%p131) target = $region35
        $region32: #{tpu_custom_call.1} parent=23 // loop_body
          %s135 = sadd.s32 %s124, %s130
          %s136 = sld [smem:[#allocation4 + %s135]]
          %s137 = scalar_lea.vmem [#allocation6], %s136
          %s138 = scalar_lea.vmem %s122, %s130 [#allocation9]
          // Predicated region
          $region36: #{tpu_custom_call.1} parent=32 // pred_check
            _
          $region37: #{tpu_custom_call.1} parent=32 // pred_check_branch
            %140 = sbr.rel target = $region39
          $region38: #{tpu_custom_call.1} parent=32 // pred_region
            // Predicated region
            $region51: #{tpu_custom_call.1} parent=38 // pred_check
              _
            $region52: #{tpu_custom_call.1} parent=38 // pred_check_branch
              %156 = sbr.rel (0) target = $region54
            $region53: #{tpu_custom_call.1} parent=38 // pred_region
              %s158 = ssub.s32 2, 1
              loop: start=0, step=1, limit=1
              $region55: #{tpu_custom_call.1} parent=53 // loop_pre_header
                _
              $region56: #{tpu_custom_call.1} parent=53 // loop_header
                %s160 = sphi 0, %s164
                %p161 = scmp.ge.s32.totalorder %s160, 1
                %s165 = sphi %s137, %s137
                %s166 = sphi %s138, %s138
              $region57: #{tpu_custom_call.1} parent=53 // loop_header_branch
                %163 = sbr.rel (%p161) target = $region61
              $region58: #{tpu_custom_call.1} parent=53 // loop_body
                %v167 = vld [vmem:[%s165] sm:%s158]
                %168 = vst [vmem:[%s166] sm:%s158] %v167
              $region59: #{tpu_custom_call.1} parent=53 // loop_footer
                %s164 = sadd.s32 1, %s160
              $region60: #{tpu_custom_call.1} parent=53 // loop_footer_branch
                %159 = sbr.rel target = $region56
              $region61: #{tpu_custom_call.1} parent=53 // loop_exit
                _
            $region54: #{tpu_custom_call.1} parent=38 // pred_fallthru
              _
          $region39: #{tpu_custom_call.1} parent=32 // pred_fallthru
            _
          // Predicated region
          $region40: #{tpu_custom_call.1} parent=32 // pred_check
            _
          $region41: #{tpu_custom_call.1} parent=32 // pred_check_branch
            %142 = sbr.rel (0) target = $region43
          $region42: #{tpu_custom_call.1} parent=32 // pred_region
            %s144 = ssub.s32 2, 1
            loop: start=0, step=1, limit=1
            $region44: #{tpu_custom_call.1} parent=42 // loop_pre_header
              _
            $region45: #{tpu_custom_call.1} parent=42 // loop_header
              %s146 = sphi 0, %s150
              %p147 = scmp.ge.s32.totalorder %s146, 1
              %s151 = sphi %s137, %s137
              %s152 = sphi %s138, %s138
            $region46: #{tpu_custom_call.1} parent=42 // loop_header_branch
              %149 = sbr.rel (%p147) target = $region50
            $region47: #{tpu_custom_call.1} parent=42 // loop_body
              %v153 = vld [vmem:[%s151] sm:%s144]
              %154 = vst [vmem:[%s152] sm:%s144] %v153
            $region48: #{tpu_custom_call.1} parent=42 // loop_footer
              %s150 = sadd.s32 1, %s146
            $region49: #{tpu_custom_call.1} parent=42 // loop_footer_branch
              %145 = sbr.rel target = $region45
            $region50: #{tpu_custom_call.1} parent=42 // loop_exit
              _
          $region43: #{tpu_custom_call.1} parent=32 // pred_fallthru
            _
          // Predicated region
          $region62: #{tpu_custom_call.1} parent=32 // pred_check
            _
          $region63: #{tpu_custom_call.1} parent=32 // pred_check_branch
            %171 = sbr.rel (0) target = $region65
          $region64: #{tpu_custom_call.1} parent=32 // pred_region
            %172 = vsyncadd [#allocation2], 16
          $region65: #{tpu_custom_call.1} parent=32 // pred_fallthru
            _
        $region33: #{tpu_custom_call.1} parent=23 // loop_footer
          %s132 = sadd.s32 %s130, 1
        $region34: #{tpu_custom_call.1} parent=23 // loop_footer_branch
          %129 = sbr.rel target = $region30
        $region35: #{tpu_custom_call.1} parent=23 // loop_exit
          _
        // While loop
        $region66: #{tpu_custom_call.1} parent=23 // loop_pre_header
          _
        $region67: #{tpu_custom_call.1} parent=23 // loop_header
          %s174 = sphi 0, %s176
          %p175 = scmp.ge.s32.totalorder %s174, %s128
        $region68: #{tpu_custom_call.1} parent=23 // loop_header_branch
          %178 = sbr.rel (%p175) target = $region72
        $region69: #{tpu_custom_call.1} parent=23 // loop_body
          %s179 = smul.u32 1, 1
          %s180 = sshll.u32 %s179, 4
          %181 = dma.done [#allocation2], %s180
        $region70: #{tpu_custom_call.1} parent=23 // loop_footer
          %s176 = sadd.s32 %s174, 1
        $region71: #{tpu_custom_call.1} parent=23 // loop_footer_branch
          %173 = sbr.rel target = $region67
        $region72: #{tpu_custom_call.1} parent=23 // loop_exit
          _
        %s182 = sand.u32 %s56, 1
        %s183 = scalar_lea.sflag [#allocation8], %s182
        %s184 = sand.u32 %s56, 1
        %s185 = smul.addr %s184, 16
        %s186 = scalar_lea.vmem [#allocation9], %s185
        // Predicated region
        $region73: #{tpu_custom_call.1} parent=23 // pred_check
          %p187 = pneg %p66
        $region74: #{tpu_custom_call.1} parent=23 // pred_check_branch
          %189 = sbr.rel (%p187) target = $region76
        $region75: #{tpu_custom_call.1} parent=23 // pred_region
          %s190 = smul.u32 2, %s27
          %192 = vsyncadd %s183, 0
          %s193 = smul.addr %s190, 8
          %s194 = scalar_lea.hbm %s3, %s193
          %s195 = sshll.u32 %s186, 4
          %s196 = int_to_ptr.vmem [resolvable:$true] %s195
          %s197 = sshll.u32 %s194, 4
          %s198 = int_to_ptr.hbm [resolvable:$true] %s197
          %203 = dma.vmem_to_hbm [thread:$0]  %s196, 256, %s198, %s183, 128, 128, 8
        $region76: #{tpu_custom_call.1} parent=23 // pred_fallthru
          _
      $region24: #{tpu_custom_call.1} parent=5 // pred_fallthru
        _
      %p204 = scmp.le.s32.totalorder 2, %s22
      // Predicated region
      $region77: #{tpu_custom_call.1} parent=5 // pred_check
        %p205 = pneg %p204
      $region78: #{tpu_custom_call.1} parent=5 // pred_check_branch
        %207 = sbr.rel (%p205) target = $region80
      $region79: #{tpu_custom_call.1} parent=5 // pred_region
        %s208 = ssub.s32 %s22, 2
        // Predicated region
        $region81: #{tpu_custom_call.1} parent=79 // pred_check
          %p209 = pneg %p72
        $region82: #{tpu_custom_call.1} parent=79 // pred_check_branch
          %211 = sbr.rel (%p209) target = $region84
        $region83: #{tpu_custom_call.1} parent=79 // pred_region
          %s212 = sand.u32 %s57, 1
          %s213 = scalar_lea.sflag [#allocation8], %s212
          %s214 = sand.u32 %s57, 1
          %s215 = smul.addr %s214, 16
          %s216 = scalar_lea.vmem [#allocation9], %s215
          %218 = dma.done %s213, 256
        $region84: #{tpu_custom_call.1} parent=79 // pred_fallthru
          _
      $region80: #{tpu_custom_call.1} parent=5 // pred_fallthru
        _
    $region6: #{tpu_custom_call.1} parent=1 // loop_footer
      %s26 = sadd.s32 1, %s22
    $region7: #{tpu_custom_call.1} parent=1 // loop_footer_branch
      %21 = sbr.rel target = $region3
    $region8: #{tpu_custom_call.1} parent=1 // loop_exit
      _
    %219 = vsyncpa [#allocation7], 1
    %s220 = scalar_lea.sflag [#allocation7], 1
    %221 = vsyncpa %s220, 1
    %222 = vsyncpa [#allocation8], 1
    %s223 = scalar_lea.sflag [#allocation8], 1
    %224 = vsyncpa %s223, 1
  %225 = vsyncmov [#allocation2]
  %s226 = vpop.sfrf %225
  %p227 = scmp.eq.s32.totalorder %s226, 0
  %p228 = pneg %p227
  %230 = shalt.err (%p228)

</llo_original>
